<compile_context>
chip_gen: v7x
topology: tpu7x:2x2x1
jax: 0.10.0
libtpu: 0.0.40
codegen_flags: <defaults>
</compile_context>

<pallas_src>
import jax
import jax.numpy as jnp
import numpy as np
from jax.experimental import pallas as pl
from jax.experimental.pallas import tpu as pltpu


def _round_up(n, m):
    return ((n + m - 1) // m) * m


# ----------------------------- Pallas kernel --------------------------------
def _cconv1x1_kernel(x_ref, w_ref, b_ref, o_ref):
    """Fused complex 1x1 conv on a pixel tile, lane-dense output.

    x_ref: (2*Cin, tm)     [real channels ; imag channels] x pixel tile
    w_ref: (2*Cout, 2*Cin) block weight [[wr, -wi], [wi, wr]]
    b_ref: (2*Cout, 1)     bias column [br ; bi]
    o_ref: (2*Cout, tm)    [yr ; yi] x pixel tile (last dim = tm, lane-dense)
    """
    o_ref[...] = (jnp.dot(w_ref[...], x_ref[...],
                          preferred_element_type=jnp.float32)
                  + b_ref[...])


def _complex_conv1x1_nchw(x, w, b, *, tm_max=8192,
                          vmem_tile_budget_bytes=20 * 1024 * 1024):
    """Complex 1x1 conv on NCHW complex64 input (no upsampling).

    x: (B, Cin, H, W) complex64
    w: (Cout, Cin, 1, 1) complex64 (PyTorch layout)
    b: (Cout,) complex64
    returns (B, Cout, H, W) complex64
    """
    B, Cin, H, W = x.shape
    Cout = w.shape[0]
    BHW = B * H * W

    # Activations: fold batch into the pixel axis -> (2Cin, B*H*W),
    # [real ; imag] stacked along channels, pixels last (lane axis).
    xr = jnp.transpose(jnp.real(x), (1, 0, 2, 3)).reshape(Cin, BHW)
    xi = jnp.transpose(jnp.imag(x), (1, 0, 2, 3)).reshape(Cin, BHW)
    xf = jnp.concatenate([xr, xi], axis=0).astype(jnp.float32)  # (2Cin, BHW)

    # Pad pixel axis only to the next multiple of 128 (<= 127 px; fuses with
    # the real/imag/concat fusion).  Partial last *blocks* are left to Pallas.
    P = _round_up(BHW, 128)
    if P != BHW:
        xf = jnp.pad(xf, ((0, 0), (0, P - BHW)))

    # Pixel tile: sized from an explicit VMEM budget for the double-buffered
    # input+output tiles (v7x-safe), capped at tm_max, multiple of 128.
    per_px_bytes = 2 * 4 * (2 * Cin + 2 * Cout)        # 2 buffers x f32 x rows
    tm_cap = max(128, min(tm_max,
                          (vmem_tile_budget_bytes // per_px_bytes) // 128 * 128))
    if P <= tm_cap:
        # Whole problem fits in one tile; split in two when possible so both
        # v7x TensorCores get a step and the pipeline has >= 2 stages.
        tm = _round_up(pl.cdiv(P, 2), 128) if P >= 256 else P
    else:
        tm = tm_cap
    n_tiles = pl.cdiv(P, tm)

    # Block weight [[wr, -wi], [wi, wr]] and bias column [br ; bi].
    w2 = w[:, :, 0, 0]                                  # (Cout, Cin) complex
    wr = jnp.real(w2).astype(jnp.float32)
    wi = jnp.imag(w2).astype(jnp.float32)
    w_blk = jnp.concatenate(
        [jnp.concatenate([wr, -wi], axis=1),
         jnp.concatenate([wi, wr], axis=1)], axis=0)    # (2Cout, 2Cin)
    b_col = jnp.concatenate([jnp.real(b), jnp.imag(b)]).astype(jnp.float32)
    b_col = b_col.reshape(2 * Cout, 1)                  # (2Cout, 1)

    cost = pl.CostEstimate(
        flops=2 * P * (2 * Cout) * (2 * Cin),
        transcendentals=0,
        bytes_accessed=4 * (P * (2 * Cin + 2 * Cout)
                            + (2 * Cout) * (2 * Cin) + 2 * Cout),
    )

    out = pl.pallas_call(
        _cconv1x1_kernel,
        out_shape=jax.ShapeDtypeStruct((2 * Cout, P), jnp.float32),
        grid_spec=pltpu.PrefetchScalarGridSpec(
            num_scalar_prefetch=0,
            grid=(n_tiles,),
            in_specs=[
                pl.BlockSpec((2 * Cin, tm), lambda ti: (0, ti)),
                pl.BlockSpec((2 * Cout, 2 * Cin), lambda ti: (0, 0)),
                pl.BlockSpec((2 * Cout, 1), lambda ti: (0, 0)),
            ],
            out_specs=pl.BlockSpec((2 * Cout, tm), lambda ti: (0, ti)),
        ),
        compiler_params=pltpu.CompilerParams(
            dimension_semantics=("parallel",),
            vmem_limit_bytes=32 * 1024 * 1024),
        cost_estimate=cost,
    )(xf, w_blk, b_col)

    yr = out[:Cout, :BHW].reshape(Cout, B, H, W).transpose(1, 0, 2, 3)
    yi = out[Cout:, :BHW].reshape(Cout, B, H, W).transpose(1, 0, 2, 3)
    return jax.lax.complex(yr, yi)


def _nearest_upsample(y, s):
    """Single broadcast+reshape nearest-neighbor upsample (no repeat chain)."""
    if s == 1:
        return y
    B, C, H, W = y.shape
    y = jnp.broadcast_to(y[:, :, :, None, :, None], (B, C, H, s, W, s))
    return y.reshape(B, C, H * s, W * s)


# ------------------------------ Module glue ---------------------------------
def segformer_decoder_forward(features_nchw, params, scale_factors):
    """features_nchw: list of complex64 arrays (B, Cin_i, H_i, W_i).

    Returns a list of complex64 arrays (B, Cout, H_i*s_i, W_i*s_i) in NCHW,
    matching the PyTorch module output (Upsample -> 1x1 complex conv).
    """
    outputs = []
    for x, (w, b), s in zip(features_nchw, params, scale_factors):
        # Conv first (exact: 1x1 conv commutes with nearest upsampling),
        # then nearest upsample of the small Cout output (pure data movement).
        y = _complex_conv1x1_nchw(x, w, b)
        y = _nearest_upsample(y, s)
        outputs.append(y)
    return outputs


def init_params(key, out_channels, widths):
    """Deterministic complex64 conv params: weight (Cout, Cin, 1, 1), bias (Cout,)."""
    params = []
    for cin in widths:
        key, k1, k2, k3, k4 = jax.random.split(key, 5)
        scale = 1.0 / np.sqrt(cin)
        w = (jax.random.normal(k1, (out_channels, cin, 1, 1), jnp.float32)
             + 1j * jax.random.normal(k2, (out_channels, cin, 1, 1), jnp.float32)
             ).astype(jnp.complex64) * scale
        b = (jax.random.normal(k3, (out_channels,), jnp.float32)
             + 1j * jax.random.normal(k4, (out_channels,), jnp.float32)
             ).astype(jnp.complex64) * scale
        params.append((w, b))
    return params


def _reference_forward(features_nchw, params, scale_factors):
    """Pure-JAX reference: Upsample (nearest) THEN complex 1x1 conv, as in PyTorch."""
    outs = []
    for x, (w, b), s in zip(features_nchw, params, scale_factors):
        if s > 1:
            x = jnp.repeat(jnp.repeat(x, s, axis=2), s, axis=3)
        y = jnp.einsum("bchw,oc->bohw", x, w[:, :, 0, 0]) + b[None, :, None, None]
        outs.append(y)
    return outs


if __name__ == "__main__":
    key = jax.random.PRNGKey(0)

    out_channels = 8
    widths = [16, 8, 4]
    scale_factors = [2, 2, 2]
    spatial = [4, 8, 16]          # per-stage input H=W
    B = 2

    params = init_params(key, out_channels, widths)

    features = []
    for cin, hw in zip(widths, spatial):
        key, kr, ki = jax.random.split(key, 3)
        f = (jax.random.normal(kr, (B, cin, hw, hw), jnp.float32)
             + 1j * jax.random.normal(ki, (B, cin, hw, hw), jnp.float32)
             ).astype(jnp.complex64)
        features.append(f)

    outs = segformer_decoder_forward(features, params, scale_factors)
    outs = jax.block_until_ready(outs)

    # Correctness check against a pure-JAX reference (upsample-then-conv).
    refs = _reference_forward(features, params, scale_factors)
    for o, r, hw, s in zip(outs, refs, spatial, scale_factors):
        assert o.shape == (B, out_channels, hw * s, hw * s), o.shape
        assert o.dtype == jnp.complex64
        np.testing.assert_allclose(np.asarray(o), np.asarray(r),
                                   rtol=1e-3, atol=1e-3)

    print("KERNEL_OK")
</pallas_src>

<mosaic_0001>
module attributes {stable_mosaic.version = 11 : i64} {
  func.func @_cconv1x1_kernel(%arg0: i32, %arg1: memref<32x128xf32, #tpu.memory_space<vmem>>, %arg2: memref<16x32xf32, #tpu.memory_space<vmem>>, %arg3: memref<16x1xf32, #tpu.memory_space<vmem>>, %arg4: memref<16x128xf32, #tpu.memory_space<vmem>>) attributes {dimension_semantics = [#tpu.dimension_semantics<parallel>], iteration_bounds = array<i64: 1>, scalar_prefetch = 0 : i64, scratch_operands = 0 : i64, tpu.core_type = #tpu.core_type<tc>, window_params = [{transform_indices = @transform_0, window_bounds = array<i64: 32, 128>}, {pipeline_mode = #tpu.pipeline_mode<synchronous>, transform_indices = @transform_1, window_bounds = array<i64: 16, 32>}, {pipeline_mode = #tpu.pipeline_mode<synchronous>, transform_indices = @transform_2, window_bounds = array<i64: 16, 1>}, {transform_indices = @transform_3, window_bounds = array<i64: 16, 128>}]} {
    %c0 = arith.constant 0 : index
    %c0_0 = arith.constant 0 : index
    %0 = vector.load %arg2[%c0, %c0_0] : memref<16x32xf32, #tpu.memory_space<vmem>>, vector<16x32xf32>
    %c0_1 = arith.constant 0 : index
    %c0_2 = arith.constant 0 : index
    %1 = vector.load %arg1[%c0_1, %c0_2] : memref<32x128xf32, #tpu.memory_space<vmem>>, vector<32x128xf32>
    %cst = arith.constant dense<0.000000e+00> : vector<16x128xf32>
    %2 = tpu.matmul %0, %1, %cst {dimension_numbers = #tpu.dot_dimension_numbers<[1], [0], [0], [1], [0, 0, 1, 1], [], []>} : vector<16x32xf32>, vector<32x128xf32>, vector<16x128xf32> -> vector<16x128xf32>
    %c0_3 = arith.constant 0 : index
    %c0_4 = arith.constant 0 : index
    %3 = vector.load %arg3[%c0_3, %c0_4] : memref<16x1xf32, #tpu.memory_space<vmem>>, vector<16x1xf32>
    %4 = vector.broadcast %3 : vector<16x1xf32> to vector<16x128xf32>
    %5 = arith.addf %2, %4 : vector<16x128xf32>
    %c0_5 = arith.constant 0 : index
    %c0_6 = arith.constant 0 : index
    %6 = vector.load %arg4[%c0_5, %c0_6] : memref<16x128xf32, #tpu.memory_space<vmem>>, vector<16x128xf32>
    tpu.vector_store %arg4[%c0_5, %c0_6], %5 {strides = array<i32>} : memref<16x128xf32, #tpu.memory_space<vmem>>, vector<16x128xf32>,
    return
  }
  func.func @transform_0(%arg0: i32) -> (i32, i32) {
    %c0_i32 = arith.constant 0 : i32
    %c0_i32_0 = arith.constant 0 : i32
    return %c0_i32, %arg0 : i32, i32
  }
  func.func @transform_1(%arg0: i32) -> (i32, i32) {
    %c0_i32 = arith.constant 0 : i32
    %c0_i32_0 = arith.constant 0 : i32
    %c0_i32_1 = arith.constant 0 : i32
    return %c0_i32, %c0_i32_0 : i32, i32
  }
  func.func @transform_2(%arg0: i32) -> (i32, i32) {
    %c0_i32 = arith.constant 0 : i32
    %c0_i32_0 = arith.constant 0 : i32
    %c0_i32_1 = arith.constant 0 : i32
    return %c0_i32, %c0_i32_0 : i32, i32
  }
  func.func @transform_3(%arg0: i32) -> (i32, i32) {
    %c0_i32 = arith.constant 0 : i32
    %c0_i32_0 = arith.constant 0 : i32
    return %c0_i32, %arg0 : i32, i32
  }
}

</mosaic_0001>

<llo_original>
// kernel: tpu_custom_call.1
$region0: #{tpu_custom_call.1}
  #allocation0 [shape = 'u32[]', space=smem, size = 0x4, offset = 0x4, fixed_abs, tag = 'smem constant byte address 0x4 - core index']
  #allocation1 [shape = 'u32[144,128]{1,0:T(1,128)}', space=vmem, size = 0x12000, scoped, tag = 'internal scratch']
  %s0 = inlined_call_operand.hbm [shape: f32[32,128], index: 0, kind: input, shape index: {}]
  %s1 = inlined_call_operand.vmem [shape: f32[16,32], index: 1, kind: input, shape index: {}]
  %s2 = inlined_call_operand.vmem [shape: f32[16,1], index: 2, kind: input, shape index: {}]
  %s3 = inlined_call_operand.hbm [shape: f32[16,128], index: 3, kind: output, shape index: {}]
  %s4 = sld [smem:[#allocation0]]
  $region26: #{tpu_custom_call.1} parent=0
    _
  %s6 = ssub.s32 1, %s4
  %s7 = scalar_select 0, %s6, %s4
  $region1: #{tpu_custom_call.1} parent=0
    #allocation2 [shape = 'u8[16384]{0}', space=vmem, size = 0x4000, scoped, tag = 'input window, operand 0, single buffered']
    #allocation3 [shape = 's32[1]{0}', space=sflag, size = 0x4, scoped, tag = 'scoped memory for tpu_custom_call.1']
    #allocation4 [shape = 's32[1]{0}', space=sflag, size = 0x4, scoped, tag = 'scoped memory for tpu_custom_call.1']
    #allocation5 [shape = 'u8[8192]{0}', space=vmem, size = 0x2000, scoped, tag = 'output window, operand 0, single buffered']
    %8 = vsyncpa [#allocation3], 0
    %9 = vsyncpa [#allocation4], 0
    // Predicated region
    $region2: #{tpu_custom_call.1} parent=1 // pred_check
      _
    $region3: #{tpu_custom_call.1} parent=1 // pred_check_branch
      %11 = sbr.rel (0) target = $region5
    $region4: #{tpu_custom_call.1} parent=1 // pred_region
      %s13 = ssub.s32 512, 512
      %14 = vsyncadd [#allocation3], %s13
      %s15 = sshll.u32 [#allocation2], 4
      %s16 = int_to_ptr.vmem [resolvable:$true] %s15
      %21 = dma.hbm_to_vmem [thread:$0]  %s0, 512, %s16, [#allocation3], 128, 128, 8
    $region5: #{tpu_custom_call.1} parent=1 // pred_fallthru
      _
    // Predicated region
    $region6: #{tpu_custom_call.1} parent=1 // pred_check
      _
    $region7: #{tpu_custom_call.1} parent=1 // pred_check_branch
      %23 = sbr.rel (0) target = $region9
    $region8: #{tpu_custom_call.1} parent=1 // pred_region
      _
    $region9: #{tpu_custom_call.1} parent=1 // pred_fallthru
      _
    // Predicated region
    $region10: #{tpu_custom_call.1} parent=1 // pred_check
      _
    $region11: #{tpu_custom_call.1} parent=1 // pred_check_branch
      %25 = sbr.rel (0) target = $region13
    $region12: #{tpu_custom_call.1} parent=1 // pred_region
      _
    $region13: #{tpu_custom_call.1} parent=1 // pred_fallthru
      _
    // Predicated region
    $region14: #{tpu_custom_call.1} parent=1 // pred_check
      _
    $region15: #{tpu_custom_call.1} parent=1 // pred_check_branch
      %27 = sbr.rel (0) target = $region17
    $region16: #{tpu_custom_call.1} parent=1 // pred_region
      %28 = dma.done [#allocation3], 512
    $region17: #{tpu_custom_call.1} parent=1 // pred_fallthru
      _
    %v29 = vld [vmem:[%s1] sm:$0xff]
    %v30 = vld [vmem:[%s1 + $0x8] sm:$0xff]
    %v31 = vld [vmem:[#allocation2] sm:$0xff]
    %v32 = vld [vmem:[#allocation2 + $0x8] sm:$0xff]
    %v33 = vld [vmem:[#allocation2 + $0x10] sm:$0xff]
    %v34 = vld [vmem:[#allocation2 + $0x18] sm:$0xff]
    %v35 = vld [vmem:[%s2] sm:$0xff]
    %v36 = vld [vmem:[%s2 + $0x8] sm:$0xff]
    %38 = vset.pattern.permute.xlu0 0
    %39 = vperm.xlu0 %38, %v35
    %v40 = vpop.permute.xlu0 %39
    %43 = vset.pattern.permute.xlu0 0
    %44 = vperm.xlu0 %43, %v36
    %v45 = vpop.permute.xlu0 %44
    %vm47 = vcmask 261120
    %v49 = vsel %vm47, %v29, 0
    %v52 = vsel %vm47, %v30, 0
    %54 = vmatprep.subr.mxu0 0.0
    %55 = vmatpush1.msra.mxu0 %v31
    %56 = vmatprep.subr.mxu0 0.0
    %57 = vmatpush1.msra.mxu0 %v32
    %58 = vmatprep.subr.mxu0 0.0
    %59 = vmatpush1.msra.mxu0 %v33
    %60 = vmatprep.subr.mxu0 0.0
    %61 = vmatpush1.msra.mxu0 %v34
    %62 = vmatprep.subr.mxu0 0.0
    %63 = vmatpush1.msra.mxu0 0.0
    %64 = vmatprep.subr.mxu0 0.0
    %65 = vmatpush1.msra.mxu0 0.0
    %66 = vmatprep.subr.mxu0 0.0
    %67 = vmatpush1.msra.mxu0 0.0
    %68 = vmatprep.subr.mxu0 0.0
    %69 = vmatpush1.msra.mxu0 0.0
    %70 = vmatprep.subr.mxu0 0.0
    %71 = vmatpush1.msra.mxu0 0.0
    %72 = vmatprep.subr.mxu0 0.0
    %73 = vmatpush1.msra.mxu0 0.0
    %74 = vmatprep.subr.mxu0 0.0
    %75 = vmatpush1.msra.mxu0 0.0
    %76 = vmatprep.subr.mxu0 0.0
    %77 = vmatpush1.msra.mxu0 0.0
    %78 = vmatprep.subr.mxu0 0.0
    %79 = vmatpush1.msra.mxu0 0.0
    %80 = vmatprep.subr.mxu0 0.0
    %81 = vmatpush1.msra.mxu0 0.0
    %82 = vmatprep.subr.mxu0 0.0
    %83 = vmatpush1.msra.mxu0 0.0
    %84 = vmatprep.subr.mxu0 0.0
    %85 = vmatpush1.msra.mxu0 0.0
    %86 = vmatprep.subr.mxu0 0.0
    %87 = vmatpush1.msra.mxu0 0.0
    %88 = vmatprep.subr.mxu0 0.0
    %89 = vmatpush1.msra.mxu0 0.0
    %90 = vmatprep.subr.mxu0 0.0
    %91 = vmatpush1.msra.mxu0 0.0
    %92 = vmatprep.subr.mxu0 0.0
    %93 = vmatpush1.msra.mxu0 0.0
    %94 = vmatprep.subr.mxu0 0.0
    %95 = vmatpush1.msra.mxu0 0.0
    %96 = vmatprep.subr.mxu0 0.0
    %97 = vmatpush1.msra.mxu0 0.0
    %98 = vmatprep.subr.mxu0 0.0
    %99 = vmatpush1.msra.mxu0 0.0
    %100 = vmatprep.subr.mxu0 0.0
    %101 = vmatpush1.msra.mxu0 0.0
    %102 = vmatprep.subr.mxu0 0.0
    %103 = vmatpush1.msra.mxu0 0.0
    %104 = vmatprep.subr.mxu0 0.0
    %105 = vmatpush1.msra.mxu0 0.0
    %106 = vmatprep.subr.mxu0 0.0
    %107 = vmatpush1.msra.mxu0 0.0
    %108 = vmatprep.subr.mxu0 0.0
    %109 = vmatpush1.msra.mxu0 0.0
    %110 = vmatprep.subr.mxu0 0.0
    %111 = vmatpush1.msra.mxu0 0.0
    %112 = vmatprep.subr.mxu0 0.0
    %113 = vmatpush1.msra.mxu0 0.0
    %114 = vmatprep.subr.mxu0 0.0
    %115 = vmatpush1.msra.mxu0 0.0
    %116 = vmatprep.subr.mxu0 0.0
    %117 = vmatpush1.msra.mxu0 0.0
    %118 = vmatprep.mubr.f32.mxu0 0.0
    %119 = vmatmul.mubr.f32.gmra.mrb[0].mxu0 %v49
    %v120 = vpop.f32.mrb[0].mxu0
    %v121 = vadd.f32 %v40, %v120
    %v122 = vpop.f32.mrb[0].mxu0
    %123 = vmatprep.mubr.f32.mxu0 0.0
    %124 = vmatmul.mubr.f32.gmra.mrb[0].mxu0 %v52
    %v125 = vpop.f32.mrb[0].mxu0
    %v126 = vadd.f32 %v45, %v125
    %v127 = vpop.f32.mrb[0].mxu0
    %128 = vdwg.mxu0
    %129 = vst [vmem:[#allocation5] sm:$0xff] %v121
    %130 = vst [vmem:[#allocation5 + $0x8] sm:$0xff] %v126
    // Predicated region
    $region18: #{tpu_custom_call.1} parent=1 // pred_check
      _
    $region19: #{tpu_custom_call.1} parent=1 // pred_check_branch
      %132 = sbr.rel (0) target = $region21
    $region20: #{tpu_custom_call.1} parent=1 // pred_region
      %s134 = ssub.s32 256, 256
      %135 = vsyncadd [#allocation4], %s134
      %s136 = sshll.u32 [#allocation5], 4
      %s137 = int_to_ptr.vmem [resolvable:$true] %s136
      %142 = dma.vmem_to_hbm [thread:$0]  %s137, 256, %s3, [#allocation4], 128, 128, 8
    $region21: #{tpu_custom_call.1} parent=1 // pred_fallthru
      _
    // Predicated region
    $region22: #{tpu_custom_call.1} parent=1 // pred_check
      _
    $region23: #{tpu_custom_call.1} parent=1 // pred_check_branch
      %144 = sbr.rel (0) target = $region25
    $region24: #{tpu_custom_call.1} parent=1 // pred_region
      %145 = dma.done [#allocation4], 256
    $region25: #{tpu_custom_call.1} parent=1 // pred_fallthru
      _
    %146 = vsyncpa [#allocation3], 1
    %147 = vsyncpa [#allocation4], 1

</llo_original>
